<compile_context>
chip_gen: v6e
topology: v6e:2x2x1
jax: 0.10.0
libtpu: 0.0.40
codegen_flags: <defaults>
</compile_context>

<pallas_src>
import functools

import jax
import jax.numpy as jnp
from jax.experimental import pallas as pl
from jax.experimental.pallas import tpu as pltpu

_EPS = 1e-6            # F.pairwise_distance default eps (added to the difference)
_LANES = 128
_SUBLANES = 8
_MIB = 1024 * 1024
_INPUT_TILE_BYTE_CAP = 16 * _MIB   # per-input VMEM buffer target (DMA >> step overhead)


def _chip_config():
    """Returns (vmem_capacity_bytes, tensorcores_per_chip), conservative on failure."""
    vmem_cap = None
    try:
        info = pltpu.get_tpu_info()
        cap = getattr(info, "vmem_capacity_bytes", None)
        if cap:
            vmem_cap = int(cap)
    except Exception:
        pass
    if vmem_cap is None:
        # Conservative: 64 MiB fits every generation; assume a single TensorCore.
        return 64 * _MIB, 1
    # v7x exposes 64 MiB VMEM per TensorCore and has 2 TCs per chip that the
    # "parallel" grid axis shards across; v5e/v6e (128 MiB VMEM) have 1 TC.
    num_tc = 2 if vmem_cap <= 64 * _MIB else 1
    return vmem_cap, num_tc


def _triplet_tile_kernel(a_ref, p_ref, n_ref, o_ref, *,
                         margin, batch, block_rows, tiles_per_split, total_tiles):
    c = pl.program_id(0)           # batch-split index ("parallel"; TCs on v7x)
    i = pl.program_id(1)           # batch-tile index within split ("arbitrary")

    # Running max lives in the resident (8, 128) output block. Zero-init is
    # valid only because relu makes every per-row loss >= 0.
    @pl.when(i == 0)
    def _init():
        o_ref[...] = jnp.zeros_like(o_ref)

    f32 = jnp.float32
    # Cast inline so the converts fuse per-vreg (no (TB, D) f32 temp of `a`).
    dp = jnp.sqrt(jnp.sum(
        (a_ref[...].astype(f32) - p_ref[...].astype(f32) + _EPS) ** 2,
        axis=-1, keepdims=True))                                   # (TB, 1)
    dn = jnp.sqrt(jnp.sum(
        (a_ref[...].astype(f32) - n_ref[...].astype(f32) + _EPS) ** 2,
        axis=-1, keepdims=True))                                   # (TB, 1)
    loss = jnp.maximum(dp - dn + f32(margin), 0.0)                 # (TB, 1), >= 0

    # Mask rows past the real batch: edge-block garbage (possibly NaN/Inf) and
    # clamped duplicate blocks are discarded here. Uses the same clamp as the
    # index_map so the row offsets match the data that was actually fetched.
    blk = jnp.minimum(c * tiles_per_split + i, total_tiles - 1)
    rows = blk * block_rows + jax.lax.broadcasted_iota(jnp.int32, loss.shape, 0)
    loss = jnp.where(rows < batch, loss, 0.0)

    block_max = jnp.max(loss, axis=0, keepdims=True)               # (1, 1)
    o_ref[...] = jnp.maximum(o_ref[...], block_max)                # broadcast to (8, 128)


def lazy_triplet_loss(anchor, positive, negative, margin: float = 1.0):
    """Scalar float32 loss, identical to LazyTripletLoss.forward."""
    assert anchor.shape == positive.shape == negative.shape
    assert anchor.ndim == 2
    B, D = anchor.shape
    itemsize = jnp.dtype(anchor.dtype).itemsize

    vmem_cap, num_tc = _chip_config()
    # ~56 MiB on v7x (64 MiB/TC), ~100 MiB on v5e/v6e (128 MiB physical, 16/32 MiB
    # default scoped limit), with headroom for output blocks / compiler scratch.
    vmem_limit = max(32 * _MIB, min(vmem_cap - 8 * _MIB, 100 * _MIB))
    tile_budget = vmem_limit - 4 * _MIB

    # Bytes per tile-row: 3 inputs x 2 pipeline buffers (input dtype) plus
    # ~3 f32 (TB, D) in-kernel temporaries (diffs / squares).
    bytes_per_row = D * (3 * 2 * itemsize + 3 * 4)
    rows_budget = max(_SUBLANES,
                      (tile_budget // bytes_per_row) // _SUBLANES * _SUBLANES)
    rows_byte_cap = max(_SUBLANES,
                        (_INPUT_TILE_BYTE_CAP // (D * itemsize)) // _SUBLANES * _SUBLANES)

    if B < _SUBLANES:
        tb = B          # block == full array dims: always legal, no OOB rows
    else:
        tb = min(rows_budget, rows_byte_cap, B // _SUBLANES * _SUBLANES)

    total_tiles = pl.cdiv(B, tb)
    num_splits = num_tc if total_tiles >= num_tc else 1
    tiles_per_split = pl.cdiv(total_tiles, num_splits)

    def in_index_map(c, i):
        # Clamp so a split with fewer real tiles re-reads the last valid tile
        # (max is idempotent, so re-processing the same rows is harmless).
        return (jnp.minimum(c * tiles_per_split + i, total_tiles - 1), 0)

    in_spec = pl.BlockSpec((tb, D), in_index_map)

    out = pl.pallas_call(
        functools.partial(
            _triplet_tile_kernel,
            margin=float(margin), batch=B, block_rows=tb,
            tiles_per_split=tiles_per_split, total_tiles=total_tiles),
        out_shape=jax.ShapeDtypeStruct((num_splits * _SUBLANES, _LANES), jnp.float32),
        grid=(num_splits, tiles_per_split),
        in_specs=[in_spec, in_spec, in_spec],
        out_specs=pl.BlockSpec((_SUBLANES, _LANES), lambda c, i: (c, 0)),
        compiler_params=pltpu.CompilerParams(
            dimension_semantics=("parallel", "arbitrary"),
            vmem_limit_bytes=int(vmem_limit)),
    )(anchor, positive, negative)

    # Combine the per-split partial maxima (tiny num_splits x 8 x 128 reduction).
    # TODO(synk): PyTorch returns the input dtype; we always return float32.
    return jnp.max(out)


def _reference(anchor, positive, negative, margin=1.0):
    a = anchor.astype(jnp.float32)
    p = positive.astype(jnp.float32)
    n = negative.astype(jnp.float32)
    dp = jnp.sqrt(jnp.sum((a - p + _EPS) ** 2, axis=-1, keepdims=True))
    dn = jnp.sqrt(jnp.sum((a - n + _EPS) ** 2, axis=-1, keepdims=True))
    return jnp.max(jnp.maximum(dp - dn + margin, 0.0))


if __name__ == "__main__":
    key = jax.random.PRNGKey(0)
    k = jax.random.split(key, 9)

    # Case 1: tile-aligned small batch, f32.
    B, D = 8, 128
    a = jax.random.normal(k[0], (B, D), dtype=jnp.float32)
    p = jax.random.normal(k[1], (B, D), dtype=jnp.float32)
    n = jax.random.normal(k[2], (B, D), dtype=jnp.float32)
    loss = jax.block_until_ready(lazy_triplet_loss(a, p, n, margin=1.0))
    ref = _reference(a, p, n, margin=1.0)
    assert jnp.allclose(loss, ref, rtol=1e-5, atol=1e-5), (loss, ref)

    # Case 2: ragged batch / feature dims (exercises edge blocks + row masking).
    B2, D2 = 13, 96
    a2 = jax.random.normal(k[3], (B2, D2), dtype=jnp.float32)
    p2 = jax.random.normal(k[4], (B2, D2), dtype=jnp.float32)
    n2 = jax.random.normal(k[5], (B2, D2), dtype=jnp.float32)
    loss2 = jax.block_until_ready(lazy_triplet_loss(a2, p2, n2, margin=1.0))
    ref2 = _reference(a2, p2, n2, margin=1.0)
    assert jnp.allclose(loss2, ref2, rtol=1e-5, atol=1e-5), (loss2, ref2)

    # Case 3: bf16 inputs pass straight through (half the HBM traffic).
    B3, D3 = 16, 128
    a3 = jax.random.normal(k[6], (B3, D3), dtype=jnp.bfloat16)
    p3 = jax.random.normal(k[7], (B3, D3), dtype=jnp.bfloat16)
    n3 = jax.random.normal(k[8], (B3, D3), dtype=jnp.bfloat16)
    loss3 = jax.block_until_ready(lazy_triplet_loss(a3, p3, n3, margin=1.0))
    ref3 = _reference(a3, p3, n3, margin=1.0)
    assert jnp.allclose(loss3, ref3, rtol=1e-3, atol=1e-3), (loss3, ref3)

    print("KERNEL_OK")
</pallas_src>

<mosaic_0001>
module attributes {stable_mosaic.version = 11 : i64} {
  func.func @_triplet_tile_kernel(%arg0: i32, %arg1: i32, %arg2: memref<8x128xf32, #tpu.memory_space<vmem>>, %arg3: memref<8x128xf32, #tpu.memory_space<vmem>>, %arg4: memref<8x128xf32, #tpu.memory_space<vmem>>, %arg5: memref<8x128xf32, #tpu.memory_space<vmem>>) attributes {dimension_semantics = [#tpu.dimension_semantics<parallel>, #tpu.dimension_semantics<arbitrary>], iteration_bounds = array<i64: 1, 1>, scalar_prefetch = 0 : i64, scratch_operands = 0 : i64, tpu.core_type = #tpu.core_type<tc>, window_params = [{transform_indices = @transform_0, window_bounds = array<i64: 8, 128>}, {transform_indices = @transform_1, window_bounds = array<i64: 8, 128>}, {transform_indices = @transform_2, window_bounds = array<i64: 8, 128>}, {transform_indices = @transform_3, window_bounds = array<i64: 8, 128>}]} {
    %c0_i32 = arith.constant 0 : i32
    %0 = arith.cmpi eq, %arg1, %c0_i32 : i32
    %1 = arith.extui %0 : i1 to i32
    %c0_i32_0 = arith.constant 0 : i32
    %2 = arith.cmpi ne, %1, %c0_i32_0 : i32
    scf.if %2 {
      %cst_21 = arith.constant 0.000000e+00 : f32
      %43 = vector.broadcast %cst_21 : f32 to vector<8x128xf32>
      %c0_22 = arith.constant 0 : index
      %c0_23 = arith.constant 0 : index
      %44 = vector.load %arg5[%c0_22, %c0_23] : memref<8x128xf32, #tpu.memory_space<vmem>>, vector<8x128xf32>
      tpu.vector_store %arg5[%c0_22, %c0_23], %43 {strides = array<i32>} : memref<8x128xf32, #tpu.memory_space<vmem>>, vector<8x128xf32>,
    } else {
    }
    %c0 = arith.constant 0 : index
    %c0_1 = arith.constant 0 : index
    %3 = vector.load %arg2[%c0, %c0_1] : memref<8x128xf32, #tpu.memory_space<vmem>>, vector<8x128xf32>
    %c0_2 = arith.constant 0 : index
    %c0_3 = arith.constant 0 : index
    %4 = vector.load %arg3[%c0_2, %c0_3] : memref<8x128xf32, #tpu.memory_space<vmem>>, vector<8x128xf32>
    %5 = arith.subf %3, %4 : vector<8x128xf32>
    %cst = arith.constant 9.99999997E-7 : f32
    %6 = vector.broadcast %cst : f32 to vector<8x128xf32>
    %7 = arith.addf %5, %6 : vector<8x128xf32>
    %8 = arith.mulf %7, %7 : vector<8x128xf32>
    %cst_4 = arith.constant dense<0.000000e+00> : vector<8xf32>
    %9 = vector.multi_reduction <add>, %8, %cst_4 [1] : vector<8x128xf32> to vector<8xf32>
    %10 = vector.shape_cast %9 : vector<8xf32> to vector<8x1xf32>
    %11 = math.sqrt %10 : vector<8x1xf32>
    %c0_5 = arith.constant 0 : index
    %c0_6 = arith.constant 0 : index
    %12 = vector.load %arg2[%c0_5, %c0_6] : memref<8x128xf32, #tpu.memory_space<vmem>>, vector<8x128xf32>
    %c0_7 = arith.constant 0 : index
    %c0_8 = arith.constant 0 : index
    %13 = vector.load %arg4[%c0_7, %c0_8] : memref<8x128xf32, #tpu.memory_space<vmem>>, vector<8x128xf32>
    %14 = arith.subf %12, %13 : vector<8x128xf32>
    %cst_9 = arith.constant 9.99999997E-7 : f32
    %15 = vector.broadcast %cst_9 : f32 to vector<8x128xf32>
    %16 = arith.addf %14, %15 : vector<8x128xf32>
    %17 = arith.mulf %16, %16 : vector<8x128xf32>
    %cst_10 = arith.constant dense<0.000000e+00> : vector<8xf32>
    %18 = vector.multi_reduction <add>, %17, %cst_10 [1] : vector<8x128xf32> to vector<8xf32>
    %19 = vector.shape_cast %18 : vector<8xf32> to vector<8x1xf32>
    %20 = math.sqrt %19 : vector<8x1xf32>
    %21 = arith.subf %11, %20 : vector<8x1xf32>
    %cst_11 = arith.constant 1.000000e+00 : f32
    %22 = vector.broadcast %cst_11 : f32 to vector<8x1xf32>
    %23 = arith.addf %21, %22 : vector<8x1xf32>
    %cst_12 = arith.constant 0.000000e+00 : f32
    %24 = vector.broadcast %cst_12 : f32 to vector<8x1xf32>
    %25 = arith.maximumf %23, %24 : vector<8x1xf32>
    %c1_i32 = arith.constant 1 : i32
    %26 = arith.muli %arg0, %c1_i32 : i32
    %27 = arith.addi %26, %arg1 : i32
    %c0_i32_13 = arith.constant 0 : i32
    %28 = arith.minsi %27, %c0_i32_13 : i32
    %c8_i32 = arith.constant 8 : i32
    %29 = arith.muli %28, %c8_i32 : i32
    %30 = tpu.iota {dimensions = array<i32: 0>} : vector<8x1xi32>
    %31 = vector.broadcast %29 : i32 to vector<8x1xi32>
    %32 = arith.addi %31, %30 : vector<8x1xi32>
    %c8_i32_14 = arith.constant 8 : i32
    %33 = vector.broadcast %c8_i32_14 : i32 to vector<8x1xi32>
    %34 = arith.cmpi slt, %32, %33 : vector<8x1xi32>
    %cst_15 = arith.constant 0.000000e+00 : f32
    %35 = vector.broadcast %cst_15 : f32 to vector<8x1xf32>
    %36 = arith.select %34, %25, %35 : vector<8x1xi1>, vector<8x1xf32>
    %cst_16 = arith.constant dense<0xFF800000> : vector<1xf32>
    %37 = vector.multi_reduction <maximumf>, %36, %cst_16 [0] : vector<8x1xf32> to vector<1xf32>
    %38 = vector.shape_cast %37 : vector<1xf32> to vector<1x1xf32>
    %c0_17 = arith.constant 0 : index
    %c0_18 = arith.constant 0 : index
    %39 = vector.load %arg5[%c0_17, %c0_18] : memref<8x128xf32, #tpu.memory_space<vmem>>, vector<8x128xf32>
    %40 = vector.broadcast %38 : vector<1x1xf32> to vector<8x128xf32>
    %41 = arith.maximumf %39, %40 : vector<8x128xf32>
    %c0_19 = arith.constant 0 : index
    %c0_20 = arith.constant 0 : index
    %42 = vector.load %arg5[%c0_19, %c0_20] : memref<8x128xf32, #tpu.memory_space<vmem>>, vector<8x128xf32>
    tpu.vector_store %arg5[%c0_19, %c0_20], %41 {strides = array<i32>} : memref<8x128xf32, #tpu.memory_space<vmem>>, vector<8x128xf32>,
    return
  }
  func.func @transform_0(%arg0: i32, %arg1: i32) -> (i32, i32) {
    %c1_i32 = arith.constant 1 : i32
    %0 = arith.muli %arg0, %c1_i32 : i32
    %1 = arith.addi %0, %arg1 : i32
    %c0_i32 = arith.constant 0 : i32
    %2 = arith.minsi %1, %c0_i32 : i32
    %c0_i32_0 = arith.constant 0 : i32
    %c0_i32_1 = arith.constant 0 : i32
    return %2, %c0_i32_0 : i32, i32
  }
  func.func @transform_1(%arg0: i32, %arg1: i32) -> (i32, i32) {
    %c1_i32 = arith.constant 1 : i32
    %0 = arith.muli %arg0, %c1_i32 : i32
    %1 = arith.addi %0, %arg1 : i32
    %c0_i32 = arith.constant 0 : i32
    %2 = arith.minsi %1, %c0_i32 : i32
    %c0_i32_0 = arith.constant 0 : i32
    %c0_i32_1 = arith.constant 0 : i32
    return %2, %c0_i32_0 : i32, i32
  }
  func.func @transform_2(%arg0: i32, %arg1: i32) -> (i32, i32) {
    %c1_i32 = arith.constant 1 : i32
    %0 = arith.muli %arg0, %c1_i32 : i32
    %1 = arith.addi %0, %arg1 : i32
    %c0_i32 = arith.constant 0 : i32
    %2 = arith.minsi %1, %c0_i32 : i32
    %c0_i32_0 = arith.constant 0 : i32
    %c0_i32_1 = arith.constant 0 : i32
    return %2, %c0_i32_0 : i32, i32
  }
  func.func @transform_3(%arg0: i32, %arg1: i32) -> (i32, i32) {
    %c0_i32 = arith.constant 0 : i32
    %c0_i32_0 = arith.constant 0 : i32
    return %arg0, %c0_i32 : i32, i32
  }
}

</mosaic_0001>

<llo_original>
// kernel: tpu_custom_call.1
$region0: #{tpu_custom_call.1}
  #allocation0 [shape = 'u32[]', space=smem, size = 0x4, offset = 0x4, fixed_abs, tag = 'smem constant byte address 0x4 - core index']
  #allocation1 [shape = 'u32[144,128]{1,0:T(1,128)}', space=vmem, size = 0x12000, scoped, tag = 'internal scratch']
  %s0 = inlined_call_operand.hbm [shape: f32[8,128], index: 0, kind: input, shape index: {}]
  %s1 = inlined_call_operand.hbm [shape: f32[8,128], index: 1, kind: input, shape index: {}]
  %s2 = inlined_call_operand.hbm [shape: f32[8,128], index: 2, kind: input, shape index: {}]
  %s3 = inlined_call_operand.hbm [shape: f32[8,128], index: 3, kind: output, shape index: {}]
  %s4 = sld [smem:[#allocation0]]
  $region38: #{tpu_custom_call.1} parent=0
    _
  %s6 = ssub.s32 1, %s4
  %s7 = scalar_select 0, %s6, %s4
  $region1: #{tpu_custom_call.1} parent=0
    #allocation2 [shape = 'u8[4096]{0}', space=vmem, size = 0x1000, scoped, tag = 'input window, operand 0, single buffered']
    #allocation3 [shape = 's32[1]{0}', space=sflag, size = 0x4, scoped, tag = 'scoped memory for tpu_custom_call.1']
    #allocation4 [shape = 's32[1]{0}', space=sflag, size = 0x4, scoped, tag = 'scoped memory for tpu_custom_call.1']
    #allocation5 [shape = 'u8[4096]{0}', space=vmem, size = 0x1000, scoped, tag = 'input window, operand 1, single buffered']
    #allocation6 [shape = 's32[1]{0}', space=sflag, size = 0x4, scoped, tag = 'scoped memory for tpu_custom_call.1']
    #allocation7 [shape = 'u8[4096]{0}', space=vmem, size = 0x1000, scoped, tag = 'input window, operand 2, single buffered']
    #allocation8 [shape = 'u8[4096]{0}', space=vmem, size = 0x1000, scoped, tag = 'output window, operand 0, single buffered']
    %8 = vsyncpa [#allocation3], 0
    %9 = vsyncpa [#allocation6], 0
    %10 = vsyncpa [#allocation4], 0
    // Predicated region
    $region2: #{tpu_custom_call.1} parent=1 // pred_check
      _
    $region3: #{tpu_custom_call.1} parent=1 // pred_check_branch
      %12 = sbr.rel (0) target = $region5
    $region4: #{tpu_custom_call.1} parent=1 // pred_region
      %s13 = sadd.s32 0, 0
      %p14 = scmp.lt.s32.totalorder %s13, 0
      %s15 = scalar_select %p14, %s13, 0
      %s17 = ssub.s32 128, 128
      %18 = vsyncadd [#allocation3], %s17
      %s19 = smul.addr %s15, 128
      %s20 = scalar_lea.hbm %s0, %s19
      %s22 = sshll.u32 [#allocation2], 4
      %s23 = int_to_ptr.vmem [resolvable:$true] %s22
      %25 = dma.hbm_to_vmem [thread:$0]  %s20, 128, %s23, [#allocation3]
    $region5: #{tpu_custom_call.1} parent=1 // pred_fallthru
      _
    // Predicated region
    $region6: #{tpu_custom_call.1} parent=1 // pred_check
      _
    $region7: #{tpu_custom_call.1} parent=1 // pred_check_branch
      %27 = sbr.rel (0) target = $region9
    $region8: #{tpu_custom_call.1} parent=1 // pred_region
      %s28 = sadd.s32 0, 0
      %p29 = scmp.lt.s32.totalorder %s28, 0
      %s30 = scalar_select %p29, %s28, 0
      %s32 = ssub.s32 128, 128
      %33 = vsyncadd [#allocation6], %s32
      %s34 = smul.addr %s30, 128
      %s35 = scalar_lea.hbm %s1, %s34
      %s37 = sshll.u32 [#allocation5], 4
      %s38 = int_to_ptr.vmem [resolvable:$true] %s37
      %40 = dma.hbm_to_vmem [thread:$0]  %s35, 128, %s38, [#allocation6]
    $region9: #{tpu_custom_call.1} parent=1 // pred_fallthru
      _
    // Predicated region
    $region10: #{tpu_custom_call.1} parent=1 // pred_check
      _
    $region11: #{tpu_custom_call.1} parent=1 // pred_check_branch
      %42 = sbr.rel (0) target = $region13
    $region12: #{tpu_custom_call.1} parent=1 // pred_region
      %s43 = sadd.s32 0, 0
      %p44 = scmp.lt.s32.totalorder %s43, 0
      %s45 = scalar_select %p44, %s43, 0
      %s47 = ssub.s32 128, 128
      %48 = vsyncadd [#allocation6], %s47
      %s49 = smul.addr %s45, 128
      %s50 = scalar_lea.hbm %s2, %s49
      %s52 = sshll.u32 [#allocation7], 4
      %s53 = int_to_ptr.vmem [resolvable:$true] %s52
      %55 = dma.hbm_to_vmem [thread:$0]  %s50, 128, %s53, [#allocation6]
    $region13: #{tpu_custom_call.1} parent=1 // pred_fallthru
      _
    // Predicated region
    $region14: #{tpu_custom_call.1} parent=1 // pred_check
      _
    $region15: #{tpu_custom_call.1} parent=1 // pred_check_branch
      %57 = sbr.rel (0) target = $region17
    $region16: #{tpu_custom_call.1} parent=1 // pred_region
      %58 = dma.done [#allocation3], 128
    $region17: #{tpu_custom_call.1} parent=1 // pred_fallthru
      _
    // Predicated region
    $region18: #{tpu_custom_call.1} parent=1 // pred_check
      _
    $region19: #{tpu_custom_call.1} parent=1 // pred_check_branch
      %60 = sbr.rel (0) target = $region21
    $region20: #{tpu_custom_call.1} parent=1 // pred_region
      %61 = dma.done [#allocation6], 128
    $region21: #{tpu_custom_call.1} parent=1 // pred_fallthru
      _
    // Predicated region
    $region22: #{tpu_custom_call.1} parent=1 // pred_check
      _
    $region23: #{tpu_custom_call.1} parent=1 // pred_check_branch
      %63 = sbr.rel (0) target = $region25
    $region24: #{tpu_custom_call.1} parent=1 // pred_region
      %64 = dma.done [#allocation6], 128
    $region25: #{tpu_custom_call.1} parent=1 // pred_fallthru
      _
    %s65 = sadd.s32 0, 0
    %p66 = scmp.lt.s32.totalorder %s65, 0
    %s67 = scalar_select %p66, %s65, 0
    %s68 = sadd.s32 0, 0
    %p69 = scmp.lt.s32.totalorder %s68, 0
    %s70 = scalar_select %p69, %s68, 0
    %s71 = sadd.s32 0, 0
    %p72 = scmp.lt.s32.totalorder %s71, 0
    %s73 = scalar_select %p72, %s71, 0
    %p74 = scmp.eq.s32.totalorder 0, 0
    // Predicated region
    $region26: #{tpu_custom_call.1} parent=1 // pred_check
      %p75 = pneg %p74
    $region27: #{tpu_custom_call.1} parent=1 // pred_check_branch
      %77 = sbr.rel (%p75) target = $region29
    $region28: #{tpu_custom_call.1} parent=1 // pred_region
      %78 = vst [vmem:[#allocation8] sm:$0xff] 0.0
    $region29: #{tpu_custom_call.1} parent=1 // pred_fallthru
      _
    %v79 = vld [vmem:[#allocation2] sm:$0xff]
    %v80 = vld [vmem:[#allocation5] sm:$0xff]
    %v81 = vsub.f32 %v79, %v80
    %v82 = vadd.f32 %v81, 1e-06
    %v83 = vmul.f32 %v82, %v82
    %84 = vadd.xlane.f32.xlu0 %v83
    %v85 = vpop.xlane.xlu0 %84
    %v86 = vrsqrt.pop %v85
    %v87 = vmul.f32 %v85, %v86
    %vm88 = vcmp.eq.f32.partialorder %v85, inf
    %v89 = vsel %vm88, %v85, %v87
    %vm90 = vcmp.eq.f32.partialorder %v85, 0.0
    %v91 = vand.u32 %v85, 2147483648
    %v92 = vsel %vm90, %v91, %v89
    %v93 = vld [vmem:[#allocation7] sm:$0xff]
    %v94 = vsub.f32 %v79, %v93
    %v95 = vadd.f32 %v94, 1e-06
    %v96 = vmul.f32 %v95, %v95
    %97 = vadd.xlane.f32.xlu0 %v96
    %v98 = vpop.xlane.xlu0 %97
    %v99 = vrsqrt.pop %v98
    %v100 = vmul.f32 %v98, %v99
    %vm101 = vcmp.eq.f32.partialorder %v98, inf
    %v102 = vsel %vm101, %v98, %v100
    %vm103 = vcmp.eq.f32.partialorder %v98, 0.0
    %v104 = vand.u32 %v98, 2147483648
    %v105 = vsel %vm103, %v104, %v102
    %v106 = vsub.f32 %v92, %v105
    %v107 = vadd.f32 %v106, 1.0
    %v108 = vmax.f32 %v107, 0.0
    %s109 = sadd.s32 0, 0
    %p110 = scmp.lt.s32.totalorder %s109, 0
    %s111 = scalar_select %p110, %s109, 0
    %s112 = smul.u32 %s111, 8
    %v113 = vlaneseq
    %v114 = vshrl.u32 %v113, 7
    %v115 = vstv %s112
    %v116 = vadd.s32 %v115, %v114
    %vm117 = vcmp.lt.s32.totalorder %v116, 8
    %v118 = vsel %vm117, %v108, 0.0
    %v119 = vrot.slane %v118, 4
    %v120 = vmax.f32 %v118, %v119
    %v121 = vrot.slane %v120, 2
    %v122 = vmax.f32 %v120, %v121
    %v123 = vrot.slane %v122, 1
    %v124 = vmax.f32 %v122, %v123
    %v125 = vld [vmem:[#allocation8] sm:$0xff]
    %v126 = vmax.f32 %v125, %v124
    %127 = vst [vmem:[#allocation8] sm:$0xff] %v126
    // Predicated region
    $region30: #{tpu_custom_call.1} parent=1 // pred_check
      _
    $region31: #{tpu_custom_call.1} parent=1 // pred_check_branch
      %129 = sbr.rel (0) target = $region33
    $region32: #{tpu_custom_call.1} parent=1 // pred_region
      %s131 = ssub.s32 128, 128
      %132 = vsyncadd [#allocation4], %s131
      %s134 = sshll.u32 [#allocation8], 4
      %s135 = int_to_ptr.vmem [resolvable:$true] %s134
      %137 = dma.vmem_to_hbm [thread:$0]  %s135, 128, %s3, [#allocation4]
    $region33: #{tpu_custom_call.1} parent=1 // pred_fallthru
      _
    // Predicated region
    $region34: #{tpu_custom_call.1} parent=1 // pred_check
      _
    $region35: #{tpu_custom_call.1} parent=1 // pred_check_branch
      %139 = sbr.rel (0) target = $region37
    $region36: #{tpu_custom_call.1} parent=1 // pred_region
      %140 = dma.done [#allocation4], 128
    $region37: #{tpu_custom_call.1} parent=1 // pred_fallthru
      _
    %141 = vsyncpa [#allocation3], 1
    %142 = vsyncpa [#allocation6], 1
    %143 = vsyncpa [#allocation4], 1

</llo_original>
